<compile_context>
chip_gen: v6e
topology: v6e:2x2x1
jax: 0.10.0
libtpu: 0.0.40
codegen_flags: <defaults>
</compile_context>

<pallas_src>
import functools
import math

import jax
import jax.numpy as jnp
from jax import lax
from jax.experimental import pallas as pl
from jax.experimental.pallas import tpu as pltpu

LANES = 128
SUBLANE_GROUP = 16                      # middle dim of the 3-D slab
GROUP_ELEMS = SUBLANE_GROUP * LANES     # 2048 elements per leading "group"
MAX_BLOCK_GROUPS = 512                  # 512 groups = 8192 rows = 4 MiB f32/block
CHUNK_GROUPS = 64                       # in-kernel chunk (bounds f32 temporaries)
NUM_CORE_SPLITS = 2                     # leading "parallel" grid axis (v7x megacore)


def _round_up(x, m):
    return ((x + m - 1) // m) * m


def _awing_kernel(yt_ref, yp_ref, out_ref, acc_ref, *,
                  inv_n, omega, theta, inv_eps, alpha, log_t, inv_t,
                  omega_inv_eps, lead, block_lead, chunk_groups, n_inner,
                  chunk_shift, split_groups, needs_mask):
    c = pl.program_id(0)                 # core-split index
    i = pl.program_id(1)                 # block index within this core's range

    @pl.when(i == 0)
    def _():
        acc_ref[...] = jnp.zeros_like(acc_ref)

    chunk_idx = i + c * chunk_shift          # global block index for this step
    block_base_group = chunk_idx * block_lead

    def partial_sum(yt_raw, yp_raw, base_group):
        yt = yt_raw.astype(jnp.float32)
        yp = yp_raw.astype(jnp.float32)
        # sigmoid via a single EUP tanh: sigmoid(x) = 0.5*tanh(0.5*x) + 0.5
        delta = jnp.abs(yt - (0.5 * jnp.tanh(0.5 * yp) + 0.5))
        p = alpha - yt                       # > 0 for targets in [0, 1]
        nl = delta < theta                   # non-linear branch mask
        x = delta if inv_eps == 1.0 else delta * inv_eps
        pos = x > 0.0
        # Shared pow: base is x on the non-linear branch, theta/eps (constant)
        # on the linear branch; one log + one exp covers both.  torch.pow's
        # 0 ** positive == 0 is preserved via the `pos` mask.
        log_u = jnp.where(nl, jnp.log(jnp.where(pos, x, 1.0)), log_t)
        pow_u = jnp.where(pos, jnp.exp(p * log_u), 0.0)
        one_plus = 1.0 + pow_u
        lg = jnp.log(one_plus)
        # Linear-branch slope A (only selected where pow_u == t**p):
        #   A = omega/eps * p * t**(p-1) / (1 + t**p)
        # approx reciprocal on the EUP + one Newton step on the VPU.
        r = pl.reciprocal(one_plus, approx=True)
        r = r * (2.0 - one_plus * r)
        a_coef = omega_inv_eps * p * (pow_u * inv_t) * r
        # loss_lin = A*delta - C = A*(delta - theta) + omega*log(1 + t**p)
        loss = omega * lg + jnp.where(nl, 0.0, a_coef * (delta - theta))
        loss = loss * jnp.where(yt >= 0.2, 11.0, 1.0)
        if needs_mask:
            grp = base_group + lax.broadcasted_iota(jnp.int32, loss.shape, 0)
            valid = jnp.logical_and(grp >= c * split_groups, grp < lead)
            loss = jnp.where(valid, loss, 0.0)
        # (K,16,128) -> (16,128): pure-VPU partial reduce in the hot loop.
        return jnp.sum(loss, axis=0)

    if n_inner == 1:
        acc_ref[...] += partial_sum(yt_ref[...], yp_ref[...], block_base_group)
    else:
        def body(j, carry):
            start = pl.multiple_of(j * chunk_groups, chunk_groups)
            sl = pl.ds(start, chunk_groups)
            acc_ref[...] += partial_sum(yt_ref[sl], yp_ref[sl],
                                        block_base_group + j * chunk_groups)
            return carry
        lax.fori_loop(0, n_inner, body, 0)

    @pl.when(i == pl.num_programs(1) - 1)
    def _():
        # One cross-lane reduce per core; partial already scaled by 1/n.
        out_ref[...] = jnp.full(out_ref.shape,
                                jnp.sum(acc_ref[...]) * inv_n,
                                dtype=out_ref.dtype)


def adaptive_wing_loss_with_logits(y_true, y_pred, *, omega=14.0, theta=0.5,
                                    epsilon=1.0, alpha=2.1,
                                    max_block_groups=MAX_BLOCK_GROUPS,
                                    chunk_groups=CHUNK_GROUPS):
    """Mean Adaptive Wing loss on logits.

    y_true: targets in [0, 1]; y_pred: raw logits.  Inputs may be float32 or
    bfloat16 (bf16 halves HBM read traffic; tiles are upcast to f32 in-kernel).
    """
    assert y_true.shape == y_pred.shape
    assert max_block_groups % chunk_groups == 0
    n = int(y_true.size)
    assert n > 0

    lead = pl.cdiv(n, GROUP_ELEMS)        # number of (16,128) groups
    n_slab = lead * GROUP_ELEMS

    def to_slab(x, pad_value):
        # TODO(synk): for inputs whose trailing dim is not a multiple of 128
        # this flatten+reshape is a relayout copy in XLA; blocking on the
        # native trailing dims (when lane-aligned) would avoid it.
        flat = x.reshape(-1)
        if n_slab != n:
            # Minimal tail pad (< 2048 elements) with zero-loss values:
            # y_true=0.5, y_pred=0 -> sigmoid=0.5 -> delta_y=0 -> loss=0.
            flat = jnp.pad(flat, (0, n_slab - n), constant_values=pad_value)
        return flat.reshape(lead, SUBLANE_GROUP, LANES)

    yt_slab = to_slab(y_true, 0.5)
    yp_slab = to_slab(y_pred, 0.0)

    # ---- tiling -------------------------------------------------------------
    if lead <= chunk_groups:
        block_lead = lead                                   # single tiny block
    else:
        block_lead = min(max_block_groups,
                         _round_up(pl.cdiv(lead, NUM_CORE_SPLITS), chunk_groups))
    n_chunks = pl.cdiv(lead, block_lead)
    inner_steps = pl.cdiv(n_chunks, NUM_CORE_SPLITS)
    # Core c handles block indices [c*chunk_shift, c*chunk_shift + inner_steps);
    # when n_chunks is odd the ranges overlap by one block, which core 1 masks
    # out via split_groups.  Every block start stays inside the array.
    chunk_shift = n_chunks - inner_steps
    split_groups = inner_steps * block_lead    # first group owned by core 1
    if block_lead % chunk_groups == 0 and block_lead > chunk_groups:
        n_inner = block_lead // chunk_groups
        kernel_chunk = chunk_groups
    else:
        n_inner = 1
        kernel_chunk = block_lead
    needs_mask = (NUM_CORE_SPLITS * inner_steps != n_chunks) or \
                 (n_chunks * block_lead != lead)

    # ---- kernel -------------------------------------------------------------
    t = float(theta) / float(epsilon)
    kernel = functools.partial(
        _awing_kernel,
        inv_n=1.0 / n,
        omega=float(omega),
        theta=float(theta),
        inv_eps=1.0 / float(epsilon),
        alpha=float(alpha),
        log_t=math.log(t),
        inv_t=1.0 / t,
        omega_inv_eps=float(omega) / float(epsilon),
        lead=lead,
        block_lead=block_lead,
        chunk_groups=kernel_chunk,
        n_inner=n_inner,
        chunk_shift=chunk_shift,
        split_groups=split_groups,
        needs_mask=needs_mask)

    in_spec = pl.BlockSpec((block_lead, SUBLANE_GROUP, LANES),
                           lambda c, i: (i + c * chunk_shift, 0, 0))
    bytes_in = int(yt_slab.size) * yt_slab.dtype.itemsize \
        + int(yp_slab.size) * yp_slab.dtype.itemsize

    out = pl.pallas_call(
        kernel,
        out_shape=jax.ShapeDtypeStruct((NUM_CORE_SPLITS, 8, LANES), jnp.float32),
        grid_spec=pltpu.PrefetchScalarGridSpec(
            num_scalar_prefetch=0,
            grid=(NUM_CORE_SPLITS, inner_steps),
            in_specs=[in_spec, in_spec],
            out_specs=pl.BlockSpec((1, 8, LANES), lambda c, i: (c, 0, 0)),
            scratch_shapes=[pltpu.VMEM((SUBLANE_GROUP, LANES), jnp.float32)],
        ),
        compiler_params=pltpu.CompilerParams(
            dimension_semantics=("parallel", "arbitrary"),
            vmem_limit_bytes=40 * 1024 * 1024),
        cost_estimate=pl.CostEstimate(
            flops=30 * n_slab,
            transcendentals=5 * n_slab,
            bytes_accessed=bytes_in + NUM_CORE_SPLITS * 8 * LANES * 4),
    )(yt_slab, yp_slab)

    # Per-core partial means (each already scaled by 1/n); grand total is their sum.
    return out[:, 0, 0].sum()


def _reference_loss(y_true, y_pred, omega=14.0, theta=0.5, epsilon=1.0, alpha=2.1):
    yt = y_true.astype(jnp.float32)
    yp = y_pred.astype(jnp.float32)
    delta_y = jnp.abs(yt - jax.nn.sigmoid(yp))
    loss_nl = omega * jnp.log(1 + (delta_y / epsilon) ** (alpha - yt))
    A = omega * (1 / (1 + (theta / epsilon) ** (alpha - yt))) * (alpha - yt) \
        * (theta / epsilon) ** (alpha - yt - 1) / epsilon
    C = theta * A - omega * jnp.log(1 + (theta / epsilon) ** (alpha - yt))
    loss_lin = A * delta_y - C
    w = 10 * (yt >= 0.2).astype(jnp.int32) + 1
    loss = jnp.where(delta_y < theta, loss_nl, loss_lin) * w
    return loss.mean()


if __name__ == "__main__":
    key = jax.random.PRNGKey(0)
    k1, k2, k3, k4, k5, k6, k7, k8 = jax.random.split(key, 8)

    # heatmap-style targets in [0, 1], raw logits for predictions
    y_true = jax.random.uniform(k1, (2, 4, 16, 16), dtype=jnp.float32)
    y_pred = jax.random.normal(k2, (2, 4, 16, 16), dtype=jnp.float32)
    loss = jax.block_until_ready(adaptive_wing_loss_with_logits(y_true, y_pred))
    ref = _reference_loss(y_true, y_pred)
    assert jnp.allclose(loss, ref, rtol=1e-5, atol=1e-5), (loss, ref)

    # odd-sized input: exercises the minimal zero-loss tail-padding path
    y_true2 = jax.random.uniform(k3, (2, 3, 15, 13), dtype=jnp.float32)
    y_pred2 = jax.random.normal(k4, (2, 3, 15, 13), dtype=jnp.float32)
    loss2 = jax.block_until_ready(adaptive_wing_loss_with_logits(y_true2, y_pred2))
    ref2 = _reference_loss(y_true2, y_pred2)
    assert jnp.allclose(loss2, ref2, rtol=1e-5, atol=1e-5), (loss2, ref2)

    # small tiling knobs: exercises multi-block grid, ragged-tail in-kernel
    # masking and the inner fori_loop chunking path
    y_true3 = jax.random.uniform(k5, (2, 4, 40, 40), dtype=jnp.float32)
    y_pred3 = jax.random.normal(k6, (2, 4, 40, 40), dtype=jnp.float32)
    loss3 = jax.block_until_ready(adaptive_wing_loss_with_logits(
        y_true3, y_pred3, max_block_groups=4, chunk_groups=2))
    ref3 = _reference_loss(y_true3, y_pred3)
    assert jnp.allclose(loss3, ref3, rtol=1e-5, atol=1e-5), (loss3, ref3)

    # odd block count: exercises the overlapping core-split assignment + mask
    y_true4 = jax.random.uniform(k7, (2, 4, 48, 48), dtype=jnp.float32)
    y_pred4 = jax.random.normal(k8, (2, 4, 48, 48), dtype=jnp.float32)
    loss4 = jax.block_until_ready(adaptive_wing_loss_with_logits(
        y_true4, y_pred4, max_block_groups=4, chunk_groups=2))
    ref4 = _reference_loss(y_true4, y_pred4)
    assert jnp.allclose(loss4, ref4, rtol=1e-5, atol=1e-5), (loss4, ref4)

    print("KERNEL_OK")
</pallas_src>

<mosaic_0001>
module attributes {stable_mosaic.version = 11 : i64} {
  func.func @_awing_kernel(%arg0: i32, %arg1: i32, %arg2: memref<1x16x128xf32, #tpu.memory_space<vmem>>, %arg3: memref<1x16x128xf32, #tpu.memory_space<vmem>>, %arg4: memref<1x8x128xf32, #tpu.memory_space<vmem>>, %arg5: memref<16x128xf32, #tpu.memory_space<vmem>>) attributes {dimension_semantics = [#tpu.dimension_semantics<parallel>, #tpu.dimension_semantics<arbitrary>], iteration_bounds = array<i64: 2, 1>, scalar_prefetch = 0 : i64, scratch_operands = 1 : i64, tpu.core_type = #tpu.core_type<tc>, window_params = [{transform_indices = @transform_0, window_bounds = array<i64: 1, 16, 128>}, {transform_indices = @transform_1, window_bounds = array<i64: 1, 16, 128>}, {transform_indices = @transform_2, window_bounds = array<i64: 1, 8, 128>}]} {
    %c0_i32 = arith.constant 0 : i32
    %0 = arith.cmpi eq, %arg1, %c0_i32 : i32
    %1 = arith.extui %0 : i1 to i32
    %c0_i32_0 = arith.constant 0 : i32
    %2 = arith.cmpi ne, %1, %c0_i32_0 : i32
    scf.if %2 {
      %cst_35 = arith.constant 0.000000e+00 : f32
      %78 = vector.broadcast %cst_35 : f32 to vector<16x128xf32>
      %c0_36 = arith.constant 0 : index
      %c0_37 = arith.constant 0 : index
      %79 = vector.load %arg5[%c0_36, %c0_37] : memref<16x128xf32, #tpu.memory_space<vmem>>, vector<16x128xf32>
      tpu.vector_store %arg5[%c0_36, %c0_37], %78 {strides = array<i32>} : memref<16x128xf32, #tpu.memory_space<vmem>>, vector<16x128xf32>,
    } else {
    }
    %c0_i32_1 = arith.constant 0 : i32
    %3 = arith.muli %arg0, %c0_i32_1 : i32
    %4 = arith.addi %arg1, %3 : i32
    %c1_i32 = arith.constant 1 : i32
    %5 = arith.muli %4, %c1_i32 : i32
    %c0 = arith.constant 0 : index
    %c0_2 = arith.constant 0 : index
    %6 = vector.load %arg5[%c0, %c0_2] : memref<16x128xf32, #tpu.memory_space<vmem>>, vector<16x128xf32>
    %c0_3 = arith.constant 0 : index
    %c0_4 = arith.constant 0 : index
    %c0_5 = arith.constant 0 : index
    %7 = vector.load %arg2[%c0_3, %c0_4, %c0_5] : memref<1x16x128xf32, #tpu.memory_space<vmem>>, vector<1x16x128xf32>
    %c0_6 = arith.constant 0 : index
    %c0_7 = arith.constant 0 : index
    %c0_8 = arith.constant 0 : index
    %8 = vector.load %arg3[%c0_6, %c0_7, %c0_8] : memref<1x16x128xf32, #tpu.memory_space<vmem>>, vector<1x16x128xf32>
    %cst = arith.constant 5.000000e-01 : f32
    %9 = vector.broadcast %cst : f32 to vector<1x16x128xf32>
    %10 = arith.mulf %9, %8 : vector<1x16x128xf32>
    %11 = math.tanh %10 : vector<1x16x128xf32>
    %cst_9 = arith.constant 5.000000e-01 : f32
    %12 = vector.broadcast %cst_9 : f32 to vector<1x16x128xf32>
    %13 = arith.mulf %12, %11 : vector<1x16x128xf32>
    %cst_10 = arith.constant 5.000000e-01 : f32
    %14 = vector.broadcast %cst_10 : f32 to vector<1x16x128xf32>
    %15 = arith.addf %13, %14 : vector<1x16x128xf32>
    %16 = arith.subf %7, %15 : vector<1x16x128xf32>
    %17 = math.absf %16 : vector<1x16x128xf32>
    %cst_11 = arith.constant 2.100000e+00 : f32
    %18 = vector.broadcast %cst_11 : f32 to vector<1x16x128xf32>
    %19 = arith.subf %18, %7 : vector<1x16x128xf32>
    %cst_12 = arith.constant 5.000000e-01 : f32
    %20 = vector.broadcast %cst_12 : f32 to vector<1x16x128xf32>
    %21 = arith.cmpf olt, %17, %20 : vector<1x16x128xf32>
    %cst_13 = arith.constant 0.000000e+00 : f32
    %22 = vector.broadcast %cst_13 : f32 to vector<1x16x128xf32>
    %23 = arith.cmpf ogt, %17, %22 : vector<1x16x128xf32>
    %cst_14 = arith.constant 1.000000e+00 : f32
    %24 = vector.broadcast %cst_14 : f32 to vector<1x16x128xf32>
    %25 = arith.select %23, %17, %24 : vector<1x16x128xi1>, vector<1x16x128xf32>
    %26 = math.log %25 : vector<1x16x128xf32>
    %cst_15 = arith.constant -0.693147182 : f32
    %27 = vector.broadcast %cst_15 : f32 to vector<1x16x128xf32>
    %28 = arith.select %21, %26, %27 : vector<1x16x128xi1>, vector<1x16x128xf32>
    %29 = arith.mulf %19, %28 : vector<1x16x128xf32>
    %30 = math.exp %29 : vector<1x16x128xf32>
    %cst_16 = arith.constant 0.000000e+00 : f32
    %31 = vector.broadcast %cst_16 : f32 to vector<1x16x128xf32>
    %32 = arith.select %23, %30, %31 : vector<1x16x128xi1>, vector<1x16x128xf32>
    %cst_17 = arith.constant 1.000000e+00 : f32
    %33 = vector.broadcast %cst_17 : f32 to vector<1x16x128xf32>
    %34 = arith.addf %33, %32 : vector<1x16x128xf32>
    %35 = math.log %34 : vector<1x16x128xf32>
    %36 = tpu.reciprocal %34 {approx = true} : vector<1x16x128xf32> -> vector<1x16x128xf32>
    %37 = arith.mulf %34, %36 : vector<1x16x128xf32>
    %cst_18 = arith.constant 2.000000e+00 : f32
    %38 = vector.broadcast %cst_18 : f32 to vector<1x16x128xf32>
    %39 = arith.subf %38, %37 : vector<1x16x128xf32>
    %40 = arith.mulf %36, %39 : vector<1x16x128xf32>
    %cst_19 = arith.constant 1.400000e+01 : f32
    %41 = vector.broadcast %cst_19 : f32 to vector<1x16x128xf32>
    %42 = arith.mulf %41, %19 : vector<1x16x128xf32>
    %cst_20 = arith.constant 2.000000e+00 : f32
    %43 = vector.broadcast %cst_20 : f32 to vector<1x16x128xf32>
    %44 = arith.mulf %32, %43 : vector<1x16x128xf32>
    %45 = arith.mulf %42, %44 : vector<1x16x128xf32>
    %46 = arith.mulf %45, %40 : vector<1x16x128xf32>
    %cst_21 = arith.constant 1.400000e+01 : f32
    %47 = vector.broadcast %cst_21 : f32 to vector<1x16x128xf32>
    %48 = arith.mulf %47, %35 : vector<1x16x128xf32>
    %cst_22 = arith.constant 5.000000e-01 : f32
    %49 = vector.broadcast %cst_22 : f32 to vector<1x16x128xf32>
    %50 = arith.subf %17, %49 : vector<1x16x128xf32>
    %51 = arith.mulf %46, %50 : vector<1x16x128xf32>
    %cst_23 = arith.constant 0.000000e+00 : f32
    %52 = vector.broadcast %cst_23 : f32 to vector<1x16x128xf32>
    %53 = arith.select %21, %52, %51 : vector<1x16x128xi1>, vector<1x16x128xf32>
    %54 = arith.addf %48, %53 : vector<1x16x128xf32>
    %cst_24 = arith.constant 2.000000e-01 : f32
    %55 = vector.broadcast %cst_24 : f32 to vector<1x16x128xf32>
    %56 = arith.cmpf oge, %7, %55 : vector<1x16x128xf32>
    %cst_25 = arith.constant 1.100000e+01 : f32
    %cst_26 = arith.constant 1.000000e+00 : f32
    %57 = vector.broadcast %cst_25 : f32 to vector<1x16x128xf32>
    %58 = vector.broadcast %cst_26 : f32 to vector<1x16x128xf32>
    %59 = arith.select %56, %57, %58 : vector<1x16x128xi1>, vector<1x16x128xf32>
    %60 = arith.mulf %54, %59 : vector<1x16x128xf32>
    %61 = tpu.iota {dimensions = array<i32: 0>} : vector<1x16x128xi32>
    %62 = vector.broadcast %5 : i32 to vector<1x16x128xi32>
    %63 = arith.addi %62, %61 : vector<1x16x128xi32>
    %c1_i32_27 = arith.constant 1 : i32
    %64 = arith.muli %arg0, %c1_i32_27 : i32
    %65 = vector.broadcast %64 : i32 to vector<1x16x128xi32>
    %66 = arith.cmpi sge, %63, %65 : vector<1x16x128xi32>
    %c1_i32_28 = arith.constant 1 : i32
    %67 = vector.broadcast %c1_i32_28 : i32 to vector<1x16x128xi32>
    %68 = arith.cmpi slt, %63, %67 : vector<1x16x128xi32>
    %69 = arith.andi %66, %68 : vector<1x16x128xi1>
    %cst_29 = arith.constant 0.000000e+00 : f32
    %70 = vector.broadcast %cst_29 : f32 to vector<1x16x128xf32>
    %71 = arith.select %69, %60, %70 : vector<1x16x128xi1>, vector<1x16x128xf32>
    %cst_30 = arith.constant dense<0.000000e+00> : vector<16x128xf32>
    %72 = vector.multi_reduction <add>, %71, %cst_30 [0] : vector<1x16x128xf32> to vector<16x128xf32>
    %73 = arith.addf %6, %72 : vector<16x128xf32>
    %c0_31 = arith.constant 0 : index
    %c0_32 = arith.constant 0 : index
    %74 = vector.load %arg5[%c0_31, %c0_32] : memref<16x128xf32, #tpu.memory_space<vmem>>, vector<16x128xf32>
    tpu.vector_store %arg5[%c0_31, %c0_32], %73 {strides = array<i32>} : memref<16x128xf32, #tpu.memory_space<vmem>>, vector<16x128xf32>,
    %c0_i32_33 = arith.constant 0 : i32
    %75 = arith.cmpi eq, %arg1, %c0_i32_33 : i32
    %76 = arith.extui %75 : i1 to i32
    %c0_i32_34 = arith.constant 0 : i32
    %77 = arith.cmpi ne, %76, %c0_i32_34 : i32
    scf.if %77 {
      %c0_35 = arith.constant 0 : index
      %c0_36 = arith.constant 0 : index
      %78 = vector.load %arg5[%c0_35, %c0_36] : memref<16x128xf32, #tpu.memory_space<vmem>>, vector<16x128xf32>
      %79 = vector.shape_cast %78 : vector<16x128xf32> to vector<1x16x128xf32>
      %cst_37 = arith.constant dense<0.000000e+00> : vector<1xf32>
      %80 = vector.multi_reduction <add>, %79, %cst_37 [1, 2] : vector<1x16x128xf32> to vector<1xf32>
      %81 = vector.shape_cast %80 : vector<1xf32> to vector<1x1x1xf32>
      %82 = vector.extract %81[0, 0, 0] : f32 from vector<1x1x1xf32>
      %cst_38 = arith.constant 4.8828125E-4 : f32
      %83 = arith.mulf %82, %cst_38 : f32
      %84 = vector.broadcast %83 : f32 to vector<1x8x128xf32>
      %c0_39 = arith.constant 0 : index
      %c0_40 = arith.constant 0 : index
      %c0_41 = arith.constant 0 : index
      %85 = vector.load %arg4[%c0_39, %c0_40, %c0_41] : memref<1x8x128xf32, #tpu.memory_space<vmem>>, vector<1x8x128xf32>
      tpu.vector_store %arg4[%c0_39, %c0_40, %c0_41], %84 {strides = array<i32>} : memref<1x8x128xf32, #tpu.memory_space<vmem>>, vector<1x8x128xf32>,
    } else {
    }
    return
  }
  func.func @transform_0(%arg0: i32, %arg1: i32) -> (i32, i32, i32) {
    %c0_i32 = arith.constant 0 : i32
    %0 = arith.muli %arg0, %c0_i32 : i32
    %1 = arith.addi %arg1, %0 : i32
    %c0_i32_0 = arith.constant 0 : i32
    %c0_i32_1 = arith.constant 0 : i32
    %c0_i32_2 = arith.constant 0 : i32
    return %1, %c0_i32_0, %c0_i32_1 : i32, i32, i32
  }
  func.func @transform_1(%arg0: i32, %arg1: i32) -> (i32, i32, i32) {
    %c0_i32 = arith.constant 0 : i32
    %0 = arith.muli %arg0, %c0_i32 : i32
    %1 = arith.addi %arg1, %0 : i32
    %c0_i32_0 = arith.constant 0 : i32
    %c0_i32_1 = arith.constant 0 : i32
    %c0_i32_2 = arith.constant 0 : i32
    return %1, %c0_i32_0, %c0_i32_1 : i32, i32, i32
  }
  func.func @transform_2(%arg0: i32, %arg1: i32) -> (i32, i32, i32) {
    %c0_i32 = arith.constant 0 : i32
    %c0_i32_0 = arith.constant 0 : i32
    %c0_i32_1 = arith.constant 0 : i32
    return %arg0, %c0_i32, %c0_i32_0 : i32, i32, i32
  }
}

</mosaic_0001>

<llo_original>
// kernel: tpu_custom_call.1
$region0: #{tpu_custom_call.1}
  #allocation0 [shape = 'u32[]', space=smem, size = 0x4, offset = 0x4, fixed_abs, tag = 'smem constant byte address 0x4 - core index']
  #allocation1 [shape = 'u32[144,128]{1,0:T(1,128)}', space=vmem, size = 0x12000, scoped, tag = 'internal scratch']
  #allocation2 [shape = 'f32[16,128]{1,0:T(8,128)}', space=vmem, size = 0x2000, scoped, tag = 'scratch operand']
  %s0 = inlined_call_operand.hbm [shape: f32[1,16,128], index: 0, kind: input, shape index: {}]
  %s1 = inlined_call_operand.hbm [shape: f32[1,16,128], index: 1, kind: input, shape index: {}]
  %s2 = inlined_call_operand.hbm [shape: f32[2,8,128], index: 2, kind: output, shape index: {}]
  %s3 = sld [smem:[#allocation0]]
  $region57: #{tpu_custom_call.1} parent=0
    _
  %s5 = ssub.s32 1, %s3
  %s6 = scalar_select 0, %s5, %s3
  $region1: #{tpu_custom_call.1} parent=0
    #allocation3 [shape = 'u8[8192]{0}', space=vmem, size = 0x2000, scoped, tag = 'input window, operand 0, single buffered']
    #allocation4 [shape = 's32[2]{0}', space=sflag, size = 0x8, scoped, tag = 'scoped memory for tpu_custom_call.1']
    #allocation5 [shape = 's32[2]{0}', space=sflag, size = 0x8, scoped, tag = 'scoped memory for tpu_custom_call.1']
    #allocation6 [shape = 'u8[8192]{0}', space=vmem, size = 0x2000, scoped, tag = 'input window, operand 1, single buffered']
    #allocation7 [shape = 's32[1]{0}', space=sflag, size = 0x4, scoped, tag = 'scoped memory for tpu_custom_call.1']
    #allocation8 [shape = 'u8[8192]{0}', space=vmem, size = 0x2000, scoped, tag = 'output window, operand 0']
    %7 = vsyncpa [#allocation4], 0
    %8 = vsyncpa [#allocation7], 0
    %9 = vsyncpa [#allocation5], 0
    %s10 = scalar_lea.sflag [#allocation5], 1
    %11 = vsyncpa %s10, 0
    loop: start=0, step=1, limit=4
    $region2: #{tpu_custom_call.1} parent=1 // loop_pre_header
      _
    $region3: #{tpu_custom_call.1} parent=1 // loop_header
      %s13 = sphi 0, %s17
      %p14 = scmp.ge.s32.totalorder %s13, 4
      %s20 = sphi 0, %s32
      %s21 = sphi 0, %s28
      %s22 = sphi 0, %s20
      %s23 = sphi 0, %s21
      %s24 = sphi 0, %s22
      %s25 = sphi 0, %s23
      %s35 = sphi 0, %s37
      %s38 = sphi 0, %s35
      %s39 = sphi 0, %s38
      %s55 = sphi 0, %s39
      %s61 = sphi 0, %s63
      %s64 = sphi 0, %s61
      %s65 = sphi 0, %s64
      %s81 = sphi 0, %s65
      %s87 = sphi 0, %s89
      %s90 = sphi 0, %s87
      %s91 = sphi 0, %s90
      %s107 = sphi 0, %s91
    $region4: #{tpu_custom_call.1} parent=1 // loop_header_branch
      %16 = sbr.rel (%p14) target = $region8
    $region5: #{tpu_custom_call.1} parent=1 // loop_body
      %s18 = ssub.s32 %s13, 1
      %s19 = ssub.s32 %s13, 2
      %s26 = sadd.s32 1, %s21
      %p27 = scmp.ge.s32.totalorder %s26, 1
      %s28 = scalar_select %p27, 0, %s26
      %s29 = sadd.s32 1, %s20
      %s30 = scalar_select %p27, %s29, %s20
      %p31 = scmp.ge.s32.totalorder %s30, 2
      %s32 = scalar_select %p31, 0, %s30
      %s33 = ssub.s32 %s21, %s28
      %p34 = scmp.eq.s32.totalorder %s33, 0
      %s36 = sadd.s32 %s35, 1
      %s37 = scalar_select %p34, %s35, %s36
      %p40 = pneg %p34
      %p41 = scmp.eq.s32.totalorder %s13, 1
      %p42 = por %p40, %p41
      %p43 = scmp.ne.s32.totalorder %s35, %s38
      %p44 = scmp.eq.s32.totalorder %s13, 0
      %p45 = por %p43, %p44
      %p46 = scmp.ne.s32.totalorder %s35, %s38
      %p47 = scmp.eq.s32.totalorder %s18, 1
      %p48 = por %p46, %p47
      %p49 = scmp.ne.s32.totalorder %s38, %s39
      %p50 = scmp.eq.s32.totalorder %s18, 0
      %p51 = por %p49, %p50
      %p52 = scmp.ne.s32.totalorder %s38, %s39
      %p53 = scmp.eq.s32.totalorder %s19, 1
      %p54 = por %p52, %p53
      %p56 = scmp.ne.s32.totalorder %s39, %s55
      %p57 = scmp.eq.s32.totalorder %s19, 0
      %p58 = por %p56, %p57
      %s59 = ssub.s32 %s21, %s28
      %p60 = scmp.eq.s32.totalorder %s59, 0
      %s62 = sadd.s32 %s61, 1
      %s63 = scalar_select %p60, %s61, %s62
      %p66 = pneg %p60
      %p67 = scmp.eq.s32.totalorder %s13, 1
      %p68 = por %p66, %p67
      %p69 = scmp.ne.s32.totalorder %s61, %s64
      %p70 = scmp.eq.s32.totalorder %s13, 0
      %p71 = por %p69, %p70
      %p72 = scmp.ne.s32.totalorder %s61, %s64
      %p73 = scmp.eq.s32.totalorder %s18, 1
      %p74 = por %p72, %p73
      %p75 = scmp.ne.s32.totalorder %s64, %s65
      %p76 = scmp.eq.s32.totalorder %s18, 0
      %p77 = por %p75, %p76
      %p78 = scmp.ne.s32.totalorder %s64, %s65
      %p79 = scmp.eq.s32.totalorder %s19, 1
      %p80 = por %p78, %p79
      %p82 = scmp.ne.s32.totalorder %s65, %s81
      %p83 = scmp.eq.s32.totalorder %s19, 0
      %p84 = por %p82, %p83
      %s85 = ssub.s32 %s20, %s32
      %p86 = scmp.eq.s32.totalorder %s85, 0
      %s88 = sadd.s32 %s87, 1
      %s89 = scalar_select %p86, %s87, %s88
      %p92 = pneg %p86
      %p93 = scmp.eq.s32.totalorder %s13, 1
      %p94 = por %p92, %p93
      %p95 = scmp.ne.s32.totalorder %s87, %s90
      %p96 = scmp.eq.s32.totalorder %s13, 0
      %p97 = por %p95, %p96
      %p98 = scmp.ne.s32.totalorder %s87, %s90
      %p99 = scmp.eq.s32.totalorder %s18, 1
      %p100 = por %p98, %p99
      %p101 = scmp.ne.s32.totalorder %s90, %s91
      %p102 = scmp.eq.s32.totalorder %s18, 0
      %p103 = por %p101, %p102
      %p104 = scmp.ne.s32.totalorder %s90, %s91
      %p105 = scmp.eq.s32.totalorder %s19, 1
      %p106 = por %p104, %p105
      %p108 = scmp.ne.s32.totalorder %s91, %s107
      %p109 = scmp.eq.s32.totalorder %s19, 0
      %p110 = por %p108, %p109
      %p111 = scmp.le.s32.totalorder 1, %s13
      %p112 = scmp.lt.s32.totalorder %s13, 3
      %p113 = pnand %p111, %p112
      %p114 = pneg %p113
      // Predicated region
      $region9: #{tpu_custom_call.1} parent=5 // pred_check
        _
      $region10: #{tpu_custom_call.1} parent=5 // pred_check_branch
        %116 = sbr.rel (%p113) target = $region12
      $region11: #{tpu_custom_call.1} parent=5 // pred_region
        %s117 = ssub.s32 %s13, 1
        // Predicated region
        $region13: #{tpu_custom_call.1} parent=11 // pred_check
          %p118 = pneg %p51
        $region14: #{tpu_custom_call.1} parent=11 // pred_check_branch
          %120 = sbr.rel (%p118) target = $region16
        $region15: #{tpu_custom_call.1} parent=11 // pred_region
          %s122 = ssub.s32 256, 256
          %123 = vsyncadd [#allocation4], %s122
          %s124 = smul.addr %s23, 2
          %s125 = smul.addr %s124, 128
          %s126 = scalar_lea.hbm %s0, %s125
          %s127 = sshll.u32 [#allocation3], 4
          %s128 = int_to_ptr.vmem [resolvable:$true] %s127
          %133 = dma.hbm_to_vmem [thread:$0]  %s126, 256, %s128, [#allocation4], 128, 128, 8
        $region16: #{tpu_custom_call.1} parent=11 // pred_fallthru
          _
        // Predicated region
        $region17: #{tpu_custom_call.1} parent=11 // pred_check
          %p134 = pneg %p77
        $region18: #{tpu_custom_call.1} parent=11 // pred_check_branch
          %136 = sbr.rel (%p134) target = $region20
        $region19: #{tpu_custom_call.1} parent=11 // pred_region
          %s138 = ssub.s32 256, 256
          %139 = vsyncadd [#allocation7], %s138
          %s140 = smul.addr %s23, 2
          %s141 = smul.addr %s140, 128
          %s142 = scalar_lea.hbm %s1, %s141
          %s143 = sshll.u32 [#allocation6], 4
          %s144 = int_to_ptr.vmem [resolvable:$true] %s143
          %149 = dma.hbm_to_vmem [thread:$0]  %s142, 256, %s144, [#allocation7], 128, 128, 8
        $region20: #{tpu_custom_call.1} parent=11 // pred_fallthru
          _
      $region12: #{tpu_custom_call.1} parent=5 // pred_fallthru
        _
      %p150 = scmp.lt.s32.totalorder %s13, 2
      // Predicated region
      $region21: #{tpu_custom_call.1} parent=5 // pred_check
        %p151 = pneg %p150
      $region22: #{tpu_custom_call.1} parent=5 // pred_check_branch
        %153 = sbr.rel (%p151) target = $region24
      $region23: #{tpu_custom_call.1} parent=5 // pred_region
        _
      $region24: #{tpu_custom_call.1} parent=5 // pred_fallthru
        _
      %p154 = scmp.le.s32.totalorder 1, %s13
      %p155 = scmp.lt.s32.totalorder %s13, 3
      %p156 = pnand %p154, %p155
      %p157 = pneg %p156
      // Predicated region
      $region25: #{tpu_custom_call.1} parent=5 // pred_check
        _
      $region26: #{tpu_custom_call.1} parent=5 // pred_check_branch
        %159 = sbr.rel (%p156) target = $region28
      $region27: #{tpu_custom_call.1} parent=5 // pred_region
        %s160 = ssub.s32 %s13, 1
        // Predicated region
        $region29: #{tpu_custom_call.1} parent=27 // pred_check
          %p161 = pneg %p51
        $region30: #{tpu_custom_call.1} parent=27 // pred_check_branch
          %163 = sbr.rel (%p161) target = $region32
        $region31: #{tpu_custom_call.1} parent=27 // pred_region
          %164 = dma.done [#allocation4], 256
        $region32: #{tpu_custom_call.1} parent=27 // pred_fallthru
          _
        // Predicated region
        $region33: #{tpu_custom_call.1} parent=27 // pred_check
          %p165 = pneg %p77
        $region34: #{tpu_custom_call.1} parent=27 // pred_check_branch
          %167 = sbr.rel (%p165) target = $region36
        $region35: #{tpu_custom_call.1} parent=27 // pred_region
          %168 = dma.done [#allocation7], 256
        $region36: #{tpu_custom_call.1} parent=27 // pred_fallthru
          _
        %p169 = pneg %p51
        %p170 = pneg %p48
        %p171 = pneg %p77
        %p172 = pneg %p74
        %p173 = pneg %p103
        %p174 = pneg %p100
        %s175 = sand.u32 %s90, 1
        %s176 = scalar_lea.sflag [#allocation5], %s175
        %s177 = sand.u32 %s90, 1
        %s178 = smul.addr %s177, 8
        %s179 = scalar_lea.vmem [#allocation8], %s178
        %p180 = scmp.eq.s32.totalorder %s23, 0
        // Predicated region
        $region37: #{tpu_custom_call.1} parent=27 // pred_check
          %p181 = pneg %p180
        $region38: #{tpu_custom_call.1} parent=27 // pred_check_branch
          %183 = sbr.rel (%p181) target = $region40
        $region39: #{tpu_custom_call.1} parent=27 // pred_region
          %184 = vst [vmem:[#allocation2] sm:$0xff] 0.0
          %185 = vst [vmem:[#allocation2 + $0x8] sm:$0xff] 0.0
        $region40: #{tpu_custom_call.1} parent=27 // pred_fallthru
          _
        %v186 = vld [vmem:[#allocation2] sm:$0xff]
        %v187 = vld [vmem:[#allocation2 + $0x8] sm:$0xff]
        %v188 = vld [vmem:[#allocation3] sm:$0xff]
        %v189 = vld [vmem:[#allocation3 + $0x8] sm:$0xff]
        %v190 = vld [vmem:[#allocation6] sm:$0xff]
        %v191 = vld [vmem:[#allocation6 + $0x8] sm:$0xff]
        %v192 = vmul.f32 %v190, 0.5
        %v193 = vmul.f32 %v191, 0.5
        %v194 = vtanh.pop %v192
        %v195 = vtanh.pop %v193
        %v196 = vmul.f32 %v194, 0.5
        %v197 = vmul.f32 %v195, 0.5
        %v198 = vadd.f32 %v196, 0.5
        %v199 = vadd.f32 %v197, 0.5
        %v200 = vsub.f32 %v188, %v198
        %v201 = vsub.f32 %v189, %v199
        %v202 = vand.u32 2147483647, %v200
        %v203 = vand.u32 2147483647, %v201
        %v204 = vsub.f32 2.1, %v188
        %v205 = vsub.f32 2.1, %v189
        %vm206 = vcmp.lt.f32.partialorder %v202, 0.5
        %vm207 = vcmp.lt.f32.partialorder %v203, 0.5
        %vm208 = vcmp.gt.f32.partialorder %v202, 0.0
        %vm209 = vcmp.gt.f32.partialorder %v203, 0.0
        %v210 = vsel %vm208, %v202, 1.0
        %v211 = vsel %vm209, %v203, 1.0
        %v212 = vlog2.pop %v210
        %v213 = vmul.f32 %v212, 0.6931472
        %v214 = vlog2.pop %v211
        %v215 = vmul.f32 %v214, 0.6931472
        %v216 = vsel %vm206, %v213, -0.6931472
        %v217 = vsel %vm207, %v215, -0.6931472
        %v218 = vmul.f32 %v204, %v216
        %v219 = vmul.f32 %v205, %v217
        %v220 = vmul.f32 %v218, 1.442695
        %v221 = vpow.pop %v220
        %v222 = vmul.f32 %v219, 1.442695
        %v223 = vpow.pop %v222
        %v224 = vsel %vm208, %v221, 0.0
        %v225 = vsel %vm209, %v223, 0.0
        %v226 = vadd.f32 %v224, 1.0
        %v227 = vadd.f32 %v225, 1.0
        %v228 = vlog2.pop %v226
        %v229 = vmul.f32 %v228, 0.6931472
        %v230 = vlog2.pop %v227
        %v231 = vmul.f32 %v230, 0.6931472
        %v232 = vrcp.pop %v226
        %v233 = vrcp.pop %v227
        %v234 = vmul.f32 %v226, %v232
        %v235 = vmul.f32 %v227, %v233
        %v236 = vsub.f32 2.0, %v234
        %v237 = vsub.f32 2.0, %v235
        %v238 = vmul.f32 %v232, %v236
        %v239 = vmul.f32 %v233, %v237
        %v240 = vmul.f32 %v204, 14.0
        %v241 = vmul.f32 %v205, 14.0
        %v242 = vmul.f32 %v224, 2.0
        %v243 = vmul.f32 %v225, 2.0
        %v244 = vmul.f32 %v240, %v242
        %v245 = vmul.f32 %v241, %v243
        %v246 = vmul.f32 %v244, %v238
        %v247 = vmul.f32 %v245, %v239
        %v248 = vmul.f32 %v229, 14.0
        %v249 = vmul.f32 %v231, 14.0
        %v250 = vsub.f32 %v202, 0.5
        %v251 = vsub.f32 %v203, 0.5
        %v252 = vmul.f32 %v246, %v250
        %v253 = vmul.f32 %v247, %v251
        %v254 = vsel %vm206, 0.0, %v252
        %v255 = vsel %vm207, 0.0, %v253
        %v256 = vadd.f32 %v248, %v254
        %v257 = vadd.f32 %v249, %v255
        %vm258 = vcmp.ge.f32.partialorder %v188, 0.2
        %vm259 = vcmp.ge.f32.partialorder %v189, 0.2
        %v260 = vsel %vm258, 11.0, 1.0
        %v261 = vsel %vm259, 11.0, 1.0
        %v262 = vmul.f32 %v256, %v260
        %v263 = vmul.f32 %v257, %v261
        %v264 = vstv %s23
        %v265 = vstv %s22
        %vm266 = vcmp.ge.s32.totalorder %v264, %v265
        %vm267 = vcmp.lt.s32.totalorder %v264, 1
        %vm268 = vmand %vm266, %vm267
        %v269 = vsel %vm268, %v262, 0.0
        %v270 = vsel %vm268, %v263, 0.0
        %v271 = vadd.f32 %v269, 0.0
        %v272 = vadd.f32 %v270, 0.0
        %v273 = vadd.f32 %v186, %v271
        %v274 = vadd.f32 %v187, %v272
        %275 = vst [vmem:[#allocation2] sm:$0xff] %v273
        %276 = vst [vmem:[#allocation2 + $0x8] sm:$0xff] %v274
        // Predicated region
        $region41: #{tpu_custom_call.1} parent=27 // pred_check
          %p277 = pneg %p180
        $region42: #{tpu_custom_call.1} parent=27 // pred_check_branch
          %279 = sbr.rel (%p277) target = $region44
        $region43: #{tpu_custom_call.1} parent=27 // pred_region
          %v280 = vld [vmem:[#allocation2] sm:$0xff]
          %v281 = vld [vmem:[#allocation2 + $0x8] sm:$0xff]
          %v282 = vadd.f32 %v280, %v281
          %283 = vadd.xlane.f32.xlu0 %v282
          %v284 = vpop.xlane.xlu0 %283
          %v285 = vrot.slane %v284, 4
          %v286 = vadd.f32 %v284, %v285
          %v287 = vrot.slane %v286, 2
          %v288 = vadd.f32 %v286, %v287
          %v289 = vrot.slane %v288, 1
          %v290 = vadd.f32 %v288, %v289
          %s291 = vtos %v290
          %s292 = smul.f32 %s291, 0.00048828125
          %v293 = vstv %s292
          %294 = vst [vmem:[%s179] sm:$0xff] %v293
        $region44: #{tpu_custom_call.1} parent=27 // pred_fallthru
          _
        %s295 = sand.u32 %s90, 1
        %s296 = scalar_lea.sflag [#allocation5], %s295
        %s297 = sand.u32 %s90, 1
        %s298 = smul.addr %s297, 8
        %s299 = scalar_lea.vmem [#allocation8], %s298
        // Predicated region
        $region45: #{tpu_custom_call.1} parent=27 // pred_check
          %p300 = pneg %p100
        $region46: #{tpu_custom_call.1} parent=27 // pred_check_branch
          %302 = sbr.rel (%p300) target = $region48
        $region47: #{tpu_custom_call.1} parent=27 // pred_region
          %s304 = ssub.s32 128, 128
          %305 = vsyncadd %s296, %s304
          %s306 = smul.addr %s22, 128
          %s307 = scalar_lea.hbm %s2, %s306
          %s309 = sshll.u32 %s299, 4
          %s310 = int_to_ptr.vmem [resolvable:$true] %s309
          %312 = dma.vmem_to_hbm [thread:$0]  %s310, 128, %s307, %s296
        $region48: #{tpu_custom_call.1} parent=27 // pred_fallthru
          _
      $region28: #{tpu_custom_call.1} parent=5 // pred_fallthru
        _
      %p313 = scmp.le.s32.totalorder 2, %s13
      // Predicated region
      $region49: #{tpu_custom_call.1} parent=5 // pred_check
        %p314 = pneg %p313
      $region50: #{tpu_custom_call.1} parent=5 // pred_check_branch
        %316 = sbr.rel (%p314) target = $region52
      $region51: #{tpu_custom_call.1} parent=5 // pred_region
        %s317 = ssub.s32 %s13, 2
        // Predicated region
        $region53: #{tpu_custom_call.1} parent=51 // pred_check
          %p318 = pneg %p106
        $region54: #{tpu_custom_call.1} parent=51 // pred_check_branch
          %320 = sbr.rel (%p318) target = $region56
        $region55: #{tpu_custom_call.1} parent=51 // pred_region
          %s321 = sand.u32 %s91, 1
          %s322 = scalar_lea.sflag [#allocation5], %s321
          %s323 = sand.u32 %s91, 1
          %s324 = smul.addr %s323, 8
          %s325 = scalar_lea.vmem [#allocation8], %s324
          %326 = dma.done %s322, 128
        $region56: #{tpu_custom_call.1} parent=51 // pred_fallthru
          _
      $region52: #{tpu_custom_call.1} parent=5 // pred_fallthru
        _
    $region6: #{tpu_custom_call.1} parent=1 // loop_footer
      %s17 = sadd.s32 1, %s13
    $region7: #{tpu_custom_call.1} parent=1 // loop_footer_branch
      %12 = sbr.rel target = $region3
    $region8: #{tpu_custom_call.1} parent=1 // loop_exit
      _
    %327 = vsyncpa [#allocation4], 1
    %s328 = scalar_lea.sflag [#allocation4], 1
    %329 = vsyncpa %s328, 1
    %330 = vsyncpa [#allocation7], 1
    %331 = vsyncpa [#allocation5], 1
    %s332 = scalar_lea.sflag [#allocation5], 1
    %333 = vsyncpa %s332, 1

</llo_original>
